<compile_context>
chip_gen: v5e
topology: v5e:2x2
jax: 0.10.0
libtpu: 0.0.40
codegen_flags: <defaults>
</compile_context>

<pallas_src>
import functools
import math

import jax
import jax.numpy as jnp
from jax import lax
from jax.experimental import pallas as pl
from jax.experimental.pallas import tpu as pltpu


_NEG = float(jnp.finfo(jnp.float32).min) / 2.0   # finite sentinel instead of -inf


def _round_up(x, m):
    return ((x + m - 1) // m) * m


def _ntxent_kernel(
    z_row_ref,     # (TM, Dp) stationary row tile (pre-normalized, pre-scaled)
    z_col_ref,     # (TN, Dp) streaming column tile (same array, different blocks)
    loss_ref,      # (TM, 1)  per-row loss, written at finalize
    m_sc,          # (TM, 1)  f32 running row max
    l_sc,          # (TM, 1)  f32 running row sum of exp
    diag_sc,       # (TM, 1)  f32 self-similarity logit (captured on i == j)
    pos_sc,        # (TM, 1)  f32 positive-pair logit (captured on the shifted diag)
    *,
    b_real: int,
    b_pad: int,
    tm: int,
    tn: int,
    half: int,
    num_tiles: int,
    n_col_pad: int,
    exp_dtype,
):
    i = pl.program_id(0)
    j = pl.program_id(1)

    # ---- per-row-tile init ----
    @pl.when(j == 0)
    def _init():
        m_sc[...] = jnp.full((tm, 1), _NEG, jnp.float32)
        l_sc[...] = jnp.zeros((tm, 1), jnp.float32)

    # ---- (TM, TN) logits tile on the MXU, NT contraction (no transpose) ----
    # Inputs are already cosine-normalized and scaled by sqrt(1/temperature) on
    # BOTH sides, so s == cos_sim / temperature directly.
    # TODO(synk): on v5e, verify in the bundle dump that this NT contraction
    # does not lower through an XLU vxpose; if it does, feed a (Dp, N)
    # pre-transposed copy for the RHS and use a standard (m,k)x(k,n) dot.
    s = lax.dot_general(
        z_row_ref[...], z_col_ref[...],
        dimension_numbers=(((1,), (1,)), ((), ())),
        preferred_element_type=jnp.float32,
    )

    # ---- online log-sum-exp over ALL columns (no per-step masking) ----
    m_prev = m_sc[...]
    m_new = jnp.maximum(m_prev, jnp.max(s, axis=-1, keepdims=True))
    # NOTE: if the vex slot (XLU reductions + MXU pushes) saturates, the row
    # sum below can be offloaded to the MXU as dot(p, ones((tn, 1))).
    p = jnp.exp((s - m_new).astype(exp_dtype))
    l_sc[...] = (jnp.exp(m_prev - m_new) * l_sc[...]
                 + jnp.sum(p.astype(jnp.float32), axis=-1, keepdims=True))
    m_sc[...] = m_new

    # ---- capture the self-similarity diagonal (only on the i == j step) ----
    @pl.when(j == i)
    def _grab_diag():
        eye = (lax.broadcasted_iota(jnp.int32, (tm, tn), 0)
               == lax.broadcasted_iota(jnp.int32, (tm, tn), 1))
        diag_sc[...] = jnp.sum(jnp.where(eye, s, 0.0), axis=-1, keepdims=True)

    # ---- capture the positive-pair logit from the shifted local diagonal ----
    # Row r's positive column is (r + b_pad) mod n_pad, which for row tile i
    # is exactly the local diagonal of column tile (i + half) mod g.
    @pl.when(j == (i + half) % num_tiles)
    def _grab_pos():
        eye = (lax.broadcasted_iota(jnp.int32, (tm, tn), 0)
               == lax.broadcasted_iota(jnp.int32, (tm, tn), 1))
        pos_sc[...] = jnp.sum(jnp.where(eye, s, 0.0), axis=-1, keepdims=True)

    # ---- finalize on the last column step ----
    @pl.when(j == num_tiles - 1)
    def _fin():
        m = m_sc[...]
        # Remove the self-similarity term exactly (same value the MXU produced),
        # and the zero-padded columns, each of which contributed exactly
        # exp(0 - m) because padded rows of z are exact zeros.
        l = l_sc[...] - jnp.exp(diag_sc[...] - m)
        if n_col_pad > 0:                                   # static (trace-time)
            l = l - float(n_col_pad) * jnp.exp(-m)
        lse = m + jnp.log(l)
        rr = i * tm + lax.broadcasted_iota(jnp.int32, (tm, 1), 0)
        row_valid = (rr < b_real) | ((rr >= b_pad) & (rr < b_pad + b_real))
        loss_ref[...] = jnp.where(row_valid, lse - pos_sc[...], 0.0)


def contrastive_loss(z1, z2, temperature: float = 0.66, *, block_rows: int = 512,
                     compute_dtype=None, bf16_exp=None, col_buffers: int = 2):
    """NT-Xent contrastive loss. z1, z2: [batch_size, feature_dim] positive pairs.

    compute_dtype: streaming/matmul dtype. Default keeps f32 for f32 inputs
        (f32-exact); pass jnp.bfloat16 to halve HBM traffic / use the fast MXU
        path on v5e/v6e (reduced precision — flagged).
    bf16_exp: run the softmax exp on the bf16 EUP path (v6e/v7x win; keep False
        on v5e). Defaults to True only when compute_dtype is bf16.
    col_buffers: pipeline depth for the column stream; set to 3 if profiling
        shows exposed DMA on that stream.
    """
    assert z1.shape == z2.shape and z1.ndim == 2
    b, d = z1.shape

    if compute_dtype is None:
        compute_dtype = jnp.bfloat16 if z1.dtype == jnp.bfloat16 else jnp.float32
    compute_dtype = jnp.dtype(compute_dtype)
    if bf16_exp is None:
        bf16_exp = compute_dtype == jnp.dtype(jnp.bfloat16)
    exp_dtype = jnp.bfloat16 if bf16_exp else jnp.float32

    itemsize = compute_dtype.itemsize
    d_pad = _round_up(d, 128)       # feature dim on lanes, MXU-aligned contraction

    # Square similarity tiles; clipped for tiny batches, multiple of 8 sublanes,
    # shrunk if streamed buffers + (tm,tn) temporaries would blow the VMEM
    # budget (v7x has only 64 MiB physical per TensorCore).
    tm = _round_up(min(block_rows, _round_up(b, 8)), 8)

    def _vmem_bytes(t):
        bufs = 2 + max(2, col_buffers)                      # row + column streams
        return bufs * t * d_pad * itemsize + 4 * t * t * 4  # + (t,t) f32 temporaries

    while tm > 8 and _vmem_bytes(tm) > 24 * 1024 * 1024:
        tm = max(8, _round_up(tm // 2, 8))
    tn = tm

    b_pad = _round_up(b, tm)        # pad each half so tiles never straddle z1/z2
    n_pad = 2 * b_pad
    g = n_pad // tm                 # number of row/column tiles (>= 2, even)
    half = b_pad // tm              # row-tile offset to the positive-pair tile
    n_col_pad = 2 * (b_pad - b)     # number of zero-padded columns per row

    # ---- hoisted pass: pad, cosine-normalize once (f32, PyTorch eps=1e-8),
    # fold sqrt(1/temperature) into BOTH sides, cast to streaming dtype. ----
    scale = 1.0 / math.sqrt(float(temperature))
    pad2 = ((0, b_pad - b), (0, d_pad - d))
    z = jnp.concatenate([jnp.pad(z1.astype(jnp.float32), pad2),
                         jnp.pad(z2.astype(jnp.float32), pad2)], axis=0)
    norm = jnp.sqrt(jnp.sum(z * z, axis=-1, keepdims=True))
    zn = ((z / jnp.maximum(norm, 1e-8)) * scale).astype(compute_dtype)

    kernel = functools.partial(
        _ntxent_kernel,
        b_real=b, b_pad=b_pad, tm=tm, tn=tn, half=half, num_tiles=g,
        n_col_pad=n_col_pad, exp_dtype=exp_dtype,
    )

    row_spec = pl.BlockSpec((tm, d_pad), lambda i, j: (i, 0))   # stationary over j
    col_kwargs = {}
    if col_buffers != 2:
        col_kwargs["pipeline_mode"] = pl.Buffered(col_buffers)
    col_spec = pl.BlockSpec((tn, d_pad), lambda i, j: (j, 0), **col_kwargs)

    per_row = pl.pallas_call(
        kernel,
        out_shape=jax.ShapeDtypeStruct((n_pad, 1), jnp.float32),
        grid_spec=pltpu.PrefetchScalarGridSpec(
            num_scalar_prefetch=0,
            grid=(g, g),
            in_specs=[row_spec, col_spec],
            out_specs=pl.BlockSpec((tm, 1), lambda i, j: (i, 0)),
            scratch_shapes=[
                pltpu.VMEM((tm, 1), jnp.float32),   # running max
                pltpu.VMEM((tm, 1), jnp.float32),   # running sum of exp
                pltpu.VMEM((tm, 1), jnp.float32),   # self-similarity logit
                pltpu.VMEM((tm, 1), jnp.float32),   # positive-pair logit
            ],
        ),
        compiler_params=pltpu.CompilerParams(
            dimension_semantics=("parallel", "arbitrary"),
            vmem_limit_bytes=32 * 1024 * 1024,
        ),
        cost_estimate=pl.CostEstimate(
            flops=2 * n_pad * n_pad * d_pad + 8 * n_pad * n_pad,
            transcendentals=n_pad * n_pad,
            bytes_accessed=(g + 1) * n_pad * d_pad * itemsize + n_pad * 4,
        ),
    )(zn, zn)

    return jnp.sum(per_row) / (2 * b)


def _reference_loss(z1, z2, temperature: float = 0.66):
    # Pure-JAX reference (mirrors the PyTorch module) for a correctness check.
    z = jnp.concatenate([z1, z2], axis=0).astype(jnp.float32)
    b = z1.shape[0]
    n = 2 * b
    zn = z / jnp.maximum(jnp.linalg.norm(z, axis=-1, keepdims=True), 1e-8)
    sim = (zn @ zn.T) / temperature
    sim = jnp.where(jnp.eye(n, dtype=bool), -jnp.inf, sim)
    labels = jnp.concatenate([jnp.arange(b) + b, jnp.arange(b)])
    logp = jax.nn.log_softmax(sim, axis=-1)
    return -jnp.mean(logp[jnp.arange(n), labels])


if __name__ == "__main__":
    key = jax.random.PRNGKey(0)
    k1, k2 = jax.random.split(key)
    batch_size, feature_dim = 4, 32
    z1 = jax.random.normal(k1, (batch_size, feature_dim), dtype=jnp.float32)
    z2 = jax.random.normal(k2, (batch_size, feature_dim), dtype=jnp.float32)

    loss = jax.jit(contrastive_loss)(z1, z2)
    jax.block_until_ready(loss)

    ref = _reference_loss(z1, z2)
    assert jnp.allclose(loss, ref, atol=1e-5, rtol=1e-5), (loss, ref)

    print("KERNEL_OK")
</pallas_src>

<mosaic_0001>
module attributes {stable_mosaic.version = 11 : i64} {
  func.func @_ntxent_kernel(%arg0: i32, %arg1: i32, %arg2: memref<8x128xf32, #tpu.memory_space<vmem>>, %arg3: memref<8x128xf32, #tpu.memory_space<vmem>>, %arg4: memref<8x1xf32, #tpu.memory_space<vmem>>, %arg5: memref<8x1xf32, #tpu.memory_space<vmem>>, %arg6: memref<8x1xf32, #tpu.memory_space<vmem>>, %arg7: memref<8x1xf32, #tpu.memory_space<vmem>>, %arg8: memref<8x1xf32, #tpu.memory_space<vmem>>) attributes {dimension_semantics = [#tpu.dimension_semantics<parallel>, #tpu.dimension_semantics<arbitrary>], iteration_bounds = array<i64: 2, 2>, scalar_prefetch = 0 : i64, scratch_operands = 4 : i64, tpu.core_type = #tpu.core_type<tc>, window_params = [{transform_indices = @transform_0, window_bounds = array<i64: 8, 128>}, {transform_indices = @transform_1, window_bounds = array<i64: 8, 128>}, {transform_indices = @transform_2, window_bounds = array<i64: 8, 1>}]} {
    %c0_i32 = arith.constant 0 : i32
    %0 = arith.cmpi eq, %arg1, %c0_i32 : i32
    %1 = arith.extui %0 : i1 to i32
    %c0_i32_0 = arith.constant 0 : i32
    %2 = arith.cmpi ne, %1, %c0_i32_0 : i32
    scf.if %2 {
      %cst_23 = arith.constant -1.70141173E+38 : f32
      %42 = vector.broadcast %cst_23 : f32 to vector<8x1xf32>
      %c0_24 = arith.constant 0 : index
      %c0_25 = arith.constant 0 : index
      %43 = vector.load %arg5[%c0_24, %c0_25] : memref<8x1xf32, #tpu.memory_space<vmem>>, vector<8x1xf32>
      tpu.vector_store %arg5[%c0_24, %c0_25], %42 {strides = array<i32>} : memref<8x1xf32, #tpu.memory_space<vmem>>, vector<8x1xf32>,
      %cst_26 = arith.constant 0.000000e+00 : f32
      %44 = vector.broadcast %cst_26 : f32 to vector<8x1xf32>
      %c0_27 = arith.constant 0 : index
      %c0_28 = arith.constant 0 : index
      %45 = vector.load %arg6[%c0_27, %c0_28] : memref<8x1xf32, #tpu.memory_space<vmem>>, vector<8x1xf32>
      tpu.vector_store %arg6[%c0_27, %c0_28], %44 {strides = array<i32>} : memref<8x1xf32, #tpu.memory_space<vmem>>, vector<8x1xf32>,
    } else {
    }
    %c0 = arith.constant 0 : index
    %c0_1 = arith.constant 0 : index
    %3 = vector.load %arg2[%c0, %c0_1] : memref<8x128xf32, #tpu.memory_space<vmem>>, vector<8x128xf32>
    %c0_2 = arith.constant 0 : index
    %c0_3 = arith.constant 0 : index
    %4 = vector.load %arg3[%c0_2, %c0_3] : memref<8x128xf32, #tpu.memory_space<vmem>>, vector<8x128xf32>
    %cst = arith.constant dense<0.000000e+00> : vector<8x8xf32>
    %5 = tpu.matmul %3, %4, %cst {dimension_numbers = #tpu.dot_dimension_numbers<[1], [1], [0], [0], [0, 0, 1, 0], [], []>} : vector<8x128xf32>, vector<8x128xf32>, vector<8x8xf32> -> vector<8x8xf32>
    %c0_4 = arith.constant 0 : index
    %c0_5 = arith.constant 0 : index
    %6 = vector.load %arg5[%c0_4, %c0_5] : memref<8x1xf32, #tpu.memory_space<vmem>>, vector<8x1xf32>
    %cst_6 = arith.constant dense<0xFF800000> : vector<8xf32>
    %7 = vector.multi_reduction <maximumf>, %5, %cst_6 [1] : vector<8x8xf32> to vector<8xf32>
    %8 = vector.shape_cast %7 : vector<8xf32> to vector<8x1xf32>
    %9 = arith.maximumf %6, %8 : vector<8x1xf32>
    %10 = vector.broadcast %9 : vector<8x1xf32> to vector<8x8xf32>
    %11 = arith.subf %5, %10 : vector<8x8xf32>
    %12 = math.exp %11 : vector<8x8xf32>
    %13 = arith.subf %6, %9 : vector<8x1xf32>
    %14 = math.exp %13 : vector<8x1xf32>
    %c0_7 = arith.constant 0 : index
    %c0_8 = arith.constant 0 : index
    %15 = vector.load %arg6[%c0_7, %c0_8] : memref<8x1xf32, #tpu.memory_space<vmem>>, vector<8x1xf32>
    %16 = arith.mulf %14, %15 : vector<8x1xf32>
    %cst_9 = arith.constant dense<0.000000e+00> : vector<8xf32>
    %17 = vector.multi_reduction <add>, %12, %cst_9 [1] : vector<8x8xf32> to vector<8xf32>
    %18 = vector.shape_cast %17 : vector<8xf32> to vector<8x1xf32>
    %19 = arith.addf %16, %18 : vector<8x1xf32>
    %c0_10 = arith.constant 0 : index
    %c0_11 = arith.constant 0 : index
    %20 = vector.load %arg6[%c0_10, %c0_11] : memref<8x1xf32, #tpu.memory_space<vmem>>, vector<8x1xf32>
    tpu.vector_store %arg6[%c0_10, %c0_11], %19 {strides = array<i32>} : memref<8x1xf32, #tpu.memory_space<vmem>>, vector<8x1xf32>,
    %c0_12 = arith.constant 0 : index
    %c0_13 = arith.constant 0 : index
    %21 = vector.load %arg5[%c0_12, %c0_13] : memref<8x1xf32, #tpu.memory_space<vmem>>, vector<8x1xf32>
    tpu.vector_store %arg5[%c0_12, %c0_13], %9 {strides = array<i32>} : memref<8x1xf32, #tpu.memory_space<vmem>>, vector<8x1xf32>,
    %22 = arith.cmpi eq, %arg1, %arg0 : i32
    %23 = arith.extui %22 : i1 to i32
    %c0_i32_14 = arith.constant 0 : i32
    %24 = arith.cmpi ne, %23, %c0_i32_14 : i32
    scf.if %24 {
      %42 = tpu.iota {dimensions = array<i32: 0>} : vector<8x8xi32>
      %43 = tpu.iota {dimensions = array<i32: 1>} : vector<8x8xi32>
      %44 = arith.cmpi eq, %42, %43 : vector<8x8xi32>
      %cst_23 = arith.constant 0.000000e+00 : f32
      %45 = vector.broadcast %cst_23 : f32 to vector<8x8xf32>
      %46 = arith.select %44, %5, %45 : vector<8x8xi1>, vector<8x8xf32>
      %cst_24 = arith.constant dense<0.000000e+00> : vector<8xf32>
      %47 = vector.multi_reduction <add>, %46, %cst_24 [1] : vector<8x8xf32> to vector<8xf32>
      %48 = vector.shape_cast %47 : vector<8xf32> to vector<8x1xf32>
      %c0_25 = arith.constant 0 : index
      %c0_26 = arith.constant 0 : index
      %49 = vector.load %arg7[%c0_25, %c0_26] : memref<8x1xf32, #tpu.memory_space<vmem>>, vector<8x1xf32>
      tpu.vector_store %arg7[%c0_25, %c0_26], %48 {strides = array<i32>} : memref<8x1xf32, #tpu.memory_space<vmem>>, vector<8x1xf32>,
    } else {
    }
    %c1_i32 = arith.constant 1 : i32
    %25 = arith.addi %arg0, %c1_i32 : i32
    %c2_i32 = arith.constant 2 : i32
    %c0_i32_15 = arith.constant 0 : i32
    %26 = arith.cmpi eq, %c2_i32, %c0_i32_15 : i32
    %c1_i32_16 = arith.constant 1 : i32
    %27 = arith.select %26, %c1_i32_16, %c2_i32 : i32
    %28 = arith.remsi %25, %27 : i32
    %c0_i32_17 = arith.constant 0 : i32
    %29 = arith.cmpi ne, %28, %c0_i32_17 : i32
    %c0_i32_18 = arith.constant 0 : i32
    %30 = arith.cmpi slt, %28, %c0_i32_18 : i32
    %c0_i32_19 = arith.constant 0 : i32
    %31 = arith.cmpi slt, %27, %c0_i32_19 : i32
    %32 = arith.xori %30, %31 : i1
    %33 = arith.andi %32, %29 : i1
    %34 = arith.addi %28, %27 : i32
    %35 = arith.select %33, %34, %28 : i32
    %36 = arith.cmpi eq, %arg1, %35 : i32
    %37 = arith.extui %36 : i1 to i32
    %c0_i32_20 = arith.constant 0 : i32
    %38 = arith.cmpi ne, %37, %c0_i32_20 : i32
    scf.if %38 {
      %42 = tpu.iota {dimensions = array<i32: 0>} : vector<8x8xi32>
      %43 = tpu.iota {dimensions = array<i32: 1>} : vector<8x8xi32>
      %44 = arith.cmpi eq, %42, %43 : vector<8x8xi32>
      %cst_23 = arith.constant 0.000000e+00 : f32
      %45 = vector.broadcast %cst_23 : f32 to vector<8x8xf32>
      %46 = arith.select %44, %5, %45 : vector<8x8xi1>, vector<8x8xf32>
      %cst_24 = arith.constant dense<0.000000e+00> : vector<8xf32>
      %47 = vector.multi_reduction <add>, %46, %cst_24 [1] : vector<8x8xf32> to vector<8xf32>
      %48 = vector.shape_cast %47 : vector<8xf32> to vector<8x1xf32>
      %c0_25 = arith.constant 0 : index
      %c0_26 = arith.constant 0 : index
      %49 = vector.load %arg8[%c0_25, %c0_26] : memref<8x1xf32, #tpu.memory_space<vmem>>, vector<8x1xf32>
      tpu.vector_store %arg8[%c0_25, %c0_26], %48 {strides = array<i32>} : memref<8x1xf32, #tpu.memory_space<vmem>>, vector<8x1xf32>,
    } else {
    }
    %c1_i32_21 = arith.constant 1 : i32
    %39 = arith.cmpi eq, %arg1, %c1_i32_21 : i32
    %40 = arith.extui %39 : i1 to i32
    %c0_i32_22 = arith.constant 0 : i32
    %41 = arith.cmpi ne, %40, %c0_i32_22 : i32
    scf.if %41 {
      %c0_23 = arith.constant 0 : index
      %c0_24 = arith.constant 0 : index
      %42 = vector.load %arg5[%c0_23, %c0_24] : memref<8x1xf32, #tpu.memory_space<vmem>>, vector<8x1xf32>
      %c0_25 = arith.constant 0 : index
      %c0_26 = arith.constant 0 : index
      %43 = vector.load %arg6[%c0_25, %c0_26] : memref<8x1xf32, #tpu.memory_space<vmem>>, vector<8x1xf32>
      %c0_27 = arith.constant 0 : index
      %c0_28 = arith.constant 0 : index
      %44 = vector.load %arg7[%c0_27, %c0_28] : memref<8x1xf32, #tpu.memory_space<vmem>>, vector<8x1xf32>
      %45 = arith.subf %44, %42 : vector<8x1xf32>
      %46 = math.exp %45 : vector<8x1xf32>
      %47 = arith.subf %43, %46 : vector<8x1xf32>
      %cst_29 = arith.constant 0.000000e+00 : f32
      %48 = vector.broadcast %cst_29 : f32 to vector<8x1xf32>
      %49 = arith.subf %48, %42 : vector<8x1xf32>
      %50 = math.exp %49 : vector<8x1xf32>
      %cst_30 = arith.constant 8.000000e+00 : f32
      %51 = vector.broadcast %cst_30 : f32 to vector<8x1xf32>
      %52 = arith.mulf %51, %50 : vector<8x1xf32>
      %53 = arith.subf %47, %52 : vector<8x1xf32>
      %54 = math.log %53 : vector<8x1xf32>
      %55 = arith.addf %42, %54 : vector<8x1xf32>
      %c8_i32 = arith.constant 8 : i32
      %56 = arith.muli %arg0, %c8_i32 : i32
      %57 = tpu.iota {dimensions = array<i32: 0>} : vector<8x1xi32>
      %58 = vector.broadcast %56 : i32 to vector<8x1xi32>
      %59 = arith.addi %58, %57 : vector<8x1xi32>
      %c4_i32 = arith.constant 4 : i32
      %60 = vector.broadcast %c4_i32 : i32 to vector<8x1xi32>
      %61 = arith.cmpi slt, %59, %60 : vector<8x1xi32>
      %c8_i32_31 = arith.constant 8 : i32
      %62 = vector.broadcast %c8_i32_31 : i32 to vector<8x1xi32>
      %63 = arith.cmpi sge, %59, %62 : vector<8x1xi32>
      %c12_i32 = arith.constant 12 : i32
      %64 = vector.broadcast %c12_i32 : i32 to vector<8x1xi32>
      %65 = arith.cmpi slt, %59, %64 : vector<8x1xi32>
      %66 = arith.andi %63, %65 : vector<8x1xi1>
      %67 = arith.ori %61, %66 : vector<8x1xi1>
      %c0_32 = arith.constant 0 : index
      %c0_33 = arith.constant 0 : index
      %68 = vector.load %arg8[%c0_32, %c0_33] : memref<8x1xf32, #tpu.memory_space<vmem>>, vector<8x1xf32>
      %69 = arith.subf %55, %68 : vector<8x1xf32>
      %cst_34 = arith.constant 0.000000e+00 : f32
      %70 = vector.broadcast %cst_34 : f32 to vector<8x1xf32>
      %71 = arith.select %67, %69, %70 : vector<8x1xi1>, vector<8x1xf32>
      %c0_35 = arith.constant 0 : index
      %c0_36 = arith.constant 0 : index
      %72 = vector.load %arg4[%c0_35, %c0_36] : memref<8x1xf32, #tpu.memory_space<vmem>>, vector<8x1xf32>
      tpu.vector_store %arg4[%c0_35, %c0_36], %71 {strides = array<i32>} : memref<8x1xf32, #tpu.memory_space<vmem>>, vector<8x1xf32>,
    } else {
    }
    return
  }
  func.func @transform_0(%arg0: i32, %arg1: i32) -> (i32, i32) {
    %c0_i32 = arith.constant 0 : i32
    %c0_i32_0 = arith.constant 0 : i32
    return %arg0, %c0_i32 : i32, i32
  }
  func.func @transform_1(%arg0: i32, %arg1: i32) -> (i32, i32) {
    %c0_i32 = arith.constant 0 : i32
    %c0_i32_0 = arith.constant 0 : i32
    return %arg1, %c0_i32 : i32, i32
  }
  func.func @transform_2(%arg0: i32, %arg1: i32) -> (i32, i32) {
    %c0_i32 = arith.constant 0 : i32
    %c0_i32_0 = arith.constant 0 : i32
    return %arg0, %c0_i32 : i32, i32
  }
}

</mosaic_0001>

<llo_original>
// kernel: contrastive_loss.1
$region0: #{contrastive_loss.1}
  #allocation0 [shape = 'u32[]', space=smem, size = 0x4, offset = 0x4, fixed_abs, tag = 'smem constant byte address 0x4 - core index']
  #allocation1 [shape = 'u32[72,128]{1,0:T(1,128)}', space=vmem, size = 0x9000, scoped, tag = 'internal scratch']
  #allocation2 [shape = 'f32[8,1]{1,0:T(8,128)}', space=vmem, size = 0x1000, scoped, tag = 'scratch operand']
  #allocation3 [shape = 'f32[8,1]{1,0:T(8,128)}', space=vmem, size = 0x1000, scoped, tag = 'scratch operand']
  #allocation4 [shape = 'f32[8,1]{1,0:T(8,128)}', space=vmem, size = 0x1000, scoped, tag = 'scratch operand']
  #allocation5 [shape = 'f32[8,1]{1,0:T(8,128)}', space=vmem, size = 0x1000, scoped, tag = 'scratch operand']
  %s0 = inlined_call_operand.vmem [shape: f32[16,128], index: 0, kind: input, shape index: {}, may-alias: {0,1}]
  %s1 = inlined_call_operand.vmem [shape: f32[16,128], index: 1, kind: input, shape index: {}, may-alias: {0,1}]
  %s2 = inlined_call_operand.vmem [shape: f32[16,1], index: 2, kind: output, shape index: {}]
  %s3 = sld [smem:[#allocation0]]
  $region57: #{contrastive_loss.1} parent=0
    _
  %s5 = ssub.s32 1, %s3
  %s6 = scalar_select 0, %s5, %s3
  loop: start=0, step=1, limit=6
  $region2: #{contrastive_loss.1} parent=0 // loop_pre_header
    _
  $region3: #{contrastive_loss.1} parent=0 // loop_header
    %s8 = sphi 0, %s12
    %p9 = scmp.ge.s32.totalorder %s8, 6
    %s15 = sphi 0, %s27
    %s16 = sphi 0, %s23
    %s17 = sphi 0, %s15
    %s18 = sphi 0, %s16
    %s19 = sphi 0, %s17
    %s20 = sphi 0, %s18
    %s30 = sphi 0, %s32
    %s33 = sphi 0, %s30
    %s34 = sphi 0, %s33
    %s50 = sphi 0, %s34
    %s56 = sphi 0, %s58
    %s59 = sphi 0, %s56
    %s60 = sphi 0, %s59
    %s76 = sphi 0, %s60
    %s82 = sphi 0, %s84
    %s85 = sphi 0, %s82
    %s86 = sphi 0, %s85
    %s102 = sphi 0, %s86
  $region4: #{contrastive_loss.1} parent=0 // loop_header_branch
    %11 = sbr.rel (%p9) target = $region8
  $region5: #{contrastive_loss.1} parent=0 // loop_body
    %s13 = ssub.s32 %s8, 1
    %s14 = ssub.s32 %s8, 2
    %s21 = sadd.s32 1, %s16
    %p22 = scmp.ge.s32.totalorder %s21, 2
    %s23 = scalar_select %p22, 0, %s21
    %s24 = sadd.s32 1, %s15
    %s25 = scalar_select %p22, %s24, %s15
    %p26 = scmp.ge.s32.totalorder %s25, 2
    %s27 = scalar_select %p26, 0, %s25
    %s28 = ssub.s32 %s15, %s27
    %p29 = scmp.eq.s32.totalorder %s28, 0
    %s31 = sadd.s32 %s30, 1
    %s32 = scalar_select %p29, %s30, %s31
    %p35 = pneg %p29
    %p36 = scmp.eq.s32.totalorder %s8, 3
    %p37 = por %p35, %p36
    %p38 = scmp.ne.s32.totalorder %s30, %s33
    %p39 = scmp.eq.s32.totalorder %s8, 0
    %p40 = por %p38, %p39
    %p41 = scmp.ne.s32.totalorder %s30, %s33
    %p42 = scmp.eq.s32.totalorder %s13, 3
    %p43 = por %p41, %p42
    %p44 = scmp.ne.s32.totalorder %s33, %s34
    %p45 = scmp.eq.s32.totalorder %s13, 0
    %p46 = por %p44, %p45
    %p47 = scmp.ne.s32.totalorder %s33, %s34
    %p48 = scmp.eq.s32.totalorder %s14, 3
    %p49 = por %p47, %p48
    %p51 = scmp.ne.s32.totalorder %s34, %s50
    %p52 = scmp.eq.s32.totalorder %s14, 0
    %p53 = por %p51, %p52
    %s54 = ssub.s32 %s16, %s23
    %p55 = scmp.eq.s32.totalorder %s54, 0
    %s57 = sadd.s32 %s56, 1
    %s58 = scalar_select %p55, %s56, %s57
    %p61 = pneg %p55
    %p62 = scmp.eq.s32.totalorder %s8, 3
    %p63 = por %p61, %p62
    %p64 = scmp.ne.s32.totalorder %s56, %s59
    %p65 = scmp.eq.s32.totalorder %s8, 0
    %p66 = por %p64, %p65
    %p67 = scmp.ne.s32.totalorder %s56, %s59
    %p68 = scmp.eq.s32.totalorder %s13, 3
    %p69 = por %p67, %p68
    %p70 = scmp.ne.s32.totalorder %s59, %s60
    %p71 = scmp.eq.s32.totalorder %s13, 0
    %p72 = por %p70, %p71
    %p73 = scmp.ne.s32.totalorder %s59, %s60
    %p74 = scmp.eq.s32.totalorder %s14, 3
    %p75 = por %p73, %p74
    %p77 = scmp.ne.s32.totalorder %s60, %s76
    %p78 = scmp.eq.s32.totalorder %s14, 0
    %p79 = por %p77, %p78
    %s80 = ssub.s32 %s15, %s27
    %p81 = scmp.eq.s32.totalorder %s80, 0
    %s83 = sadd.s32 %s82, 1
    %s84 = scalar_select %p81, %s82, %s83
    %p87 = pneg %p81
    %p88 = scmp.eq.s32.totalorder %s8, 3
    %p89 = por %p87, %p88
    %p90 = scmp.ne.s32.totalorder %s82, %s85
    %p91 = scmp.eq.s32.totalorder %s8, 0
    %p92 = por %p90, %p91
    %p93 = scmp.ne.s32.totalorder %s82, %s85
    %p94 = scmp.eq.s32.totalorder %s13, 3
    %p95 = por %p93, %p94
    %p96 = scmp.ne.s32.totalorder %s85, %s86
    %p97 = scmp.eq.s32.totalorder %s13, 0
    %p98 = por %p96, %p97
    %p99 = scmp.ne.s32.totalorder %s85, %s86
    %p100 = scmp.eq.s32.totalorder %s14, 3
    %p101 = por %p99, %p100
    %p103 = scmp.ne.s32.totalorder %s86, %s102
    %p104 = scmp.eq.s32.totalorder %s14, 0
    %p105 = por %p103, %p104
    %p106 = scmp.le.s32.totalorder 1, %s8
    %p107 = scmp.lt.s32.totalorder %s8, 5
    %p108 = pnand %p106, %p107
    %p109 = pneg %p108
    // Predicated region
    $region9: #{contrastive_loss.1} parent=5 // pred_check
      _
    $region10: #{contrastive_loss.1} parent=5 // pred_check_branch
      %111 = sbr.rel (%p108) target = $region12
    $region11: #{contrastive_loss.1} parent=5 // pred_region
      %s112 = ssub.s32 %s8, 1
    $region12: #{contrastive_loss.1} parent=5 // pred_fallthru
      _
    %p113 = scmp.lt.s32.totalorder %s8, 4
    // Predicated region
    $region13: #{contrastive_loss.1} parent=5 // pred_check
      %p114 = pneg %p113
    $region14: #{contrastive_loss.1} parent=5 // pred_check_branch
      %116 = sbr.rel (%p114) target = $region16
    $region15: #{contrastive_loss.1} parent=5 // pred_region
      // Predicated region
      $region17: #{contrastive_loss.1} parent=15 // pred_check
        %p117 = pneg %p40
      $region18: #{contrastive_loss.1} parent=15 // pred_check_branch
        %119 = sbr.rel (%p117) target = $region20
      $region19: #{contrastive_loss.1} parent=15 // pred_region
        %p120 = scmp.lt.s32.totalorder %s15, 1
        %s121 = scalar_select %p120, %s15, 1
        %s122 = smul.addr %s121, 8
        %s123 = scalar_lea.vmem %s0, %s122
      $region20: #{contrastive_loss.1} parent=15 // pred_fallthru
        _
      // Predicated region
      $region21: #{contrastive_loss.1} parent=15 // pred_check
        %p124 = pneg %p66
      $region22: #{contrastive_loss.1} parent=15 // pred_check_branch
        %126 = sbr.rel (%p124) target = $region24
      $region23: #{contrastive_loss.1} parent=15 // pred_region
        %p127 = scmp.lt.s32.totalorder %s16, 1
        %s128 = scalar_select %p127, %s16, 1
        %s129 = smul.addr %s128, 8
        %s130 = scalar_lea.vmem %s1, %s129
      $region24: #{contrastive_loss.1} parent=15 // pred_fallthru
        _
    $region16: #{contrastive_loss.1} parent=5 // pred_fallthru
      _
    %p131 = scmp.le.s32.totalorder 1, %s8
    %p132 = scmp.lt.s32.totalorder %s8, 5
    %p133 = pnand %p131, %p132
    %p134 = pneg %p133
    // Predicated region
    $region25: #{contrastive_loss.1} parent=5 // pred_check
      _
    $region26: #{contrastive_loss.1} parent=5 // pred_check_branch
      %136 = sbr.rel (%p133) target = $region28
    $region27: #{contrastive_loss.1} parent=5 // pred_region
      %s137 = ssub.s32 %s8, 1
      %p138 = scmp.lt.s32.totalorder %s17, 1
      %s139 = scalar_select %p138, %s17, 1
      %s140 = smul.addr %s139, 8
      %s141 = scalar_lea.vmem %s0, %s140
      %p142 = pneg %p46
      %p143 = pneg %p43
      %p144 = scmp.lt.s32.totalorder %s18, 1
      %s145 = scalar_select %p144, %s18, 1
      %s146 = smul.addr %s145, 8
      %s147 = scalar_lea.vmem %s1, %s146
      %p148 = pneg %p72
      %p149 = pneg %p69
      %p150 = pneg %p98
      %p151 = pneg %p95
      %p152 = scmp.lt.s32.totalorder %s17, 1
      %s153 = scalar_select %p152, %s17, 1
      %s154 = smul.addr %s153, 8
      %s155 = scalar_lea.vmem %s2, %s154
      %p156 = scmp.lt.s32.totalorder %s17, 1
      %s157 = scalar_select %p156, %s17, 1
      %s158 = smul.addr %s157, 8
      %s159 = scalar_lea.vmem %s0, %s158
      %p160 = scmp.lt.s32.totalorder %s18, 1
      %s161 = scalar_select %p160, %s18, 1
      %s162 = smul.addr %s161, 8
      %s163 = scalar_lea.vmem %s1, %s162
      %p164 = scmp.lt.s32.totalorder %s17, 1
      %s165 = scalar_select %p164, %s17, 1
      %s166 = smul.addr %s165, 8
      %s167 = scalar_lea.vmem %s2, %s166
      %p168 = scmp.eq.s32.totalorder %s18, 0
      // Predicated region
      $region29: #{contrastive_loss.1} parent=27 // pred_check
        %p169 = pneg %p168
      $region30: #{contrastive_loss.1} parent=27 // pred_check_branch
        %171 = sbr.rel (%p169) target = $region32
      $region31: #{contrastive_loss.1} parent=27 // pred_region
        %vm172 = vcmask 7168
        %173 = vst.msk [vmem:[#allocation2] sm:$0xff] %vm172, -1.7014117e+38
        %174 = vst.msk [vmem:[#allocation3] sm:$0xff] %vm172, 0.0
      $region32: #{contrastive_loss.1} parent=27 // pred_fallthru
        _
      %v175 = vld [vmem:[%s159] sm:$0xff]
      %v176 = vld [vmem:[%s163] sm:$0xff]
      %177 = vmatpush.xpose.msra.mxu0 0.0
      %178 = vmatpush.xpose.msra.mxu0 0.0
      %179 = vmatpush.xpose.msra.mxu0 0.0
      %180 = vmatpush.xpose.msra.mxu0 0.0
      %181 = vmatpush.xpose.msra.mxu0 0.0
      %182 = vmatpush.xpose.msra.mxu0 0.0
      %183 = vmatpush.xpose.msra.mxu0 0.0
      %184 = vmatpush.xpose.msra.mxu0 0.0
      %185 = vmatpush.xpose.msra.mxu0 0.0
      %186 = vmatpush.xpose.msra.mxu0 0.0
      %187 = vmatpush.xpose.msra.mxu0 0.0
      %188 = vmatpush.xpose.msra.mxu0 0.0
      %189 = vmatpush.xpose.msra.mxu0 0.0
      %190 = vmatpush.xpose.msra.mxu0 0.0
      %191 = vmatpush.xpose.msra.mxu0 0.0
      %192 = vmatpush.xpose.msra.mxu0 %v176
      %193 = vmatmul.f32.gmra.mxu0 %v175
      %v194 = vpop.f32.mrf.mxu0
      %v195 = vadd.f32 0.0, %v194
      %196 = vdwg.mxu0
      %v197 = vld [vmem:[#allocation2] sm:$0xff]
      %vm198 = vcmask 64512
      %v199 = vsel %vm198, %v195, -inf
      %200 = vmax.xlane.f32.xlu0 %v199
      %v201 = vpop.xlane.xlu0 %200
      %v202 = vmax.f32 %v197, %v201
      %204 = vset.pattern.permute.xlu0 0
      %205 = vperm.xlu0 %204, %v202
      %v206 = vpop.permute.xlu0 %205
      %v208 = vsub.f32 %v195, %v206
      %v209 = vmul.f32 %v208, 1.442695
      %v210 = vpow.pop %v209
      %v211 = vsub.f32 %v197, %v202
      %v212 = vmul.f32 %v211, 1.442695
      %v213 = vpow.pop %v212
      %v214 = vld [vmem:[#allocation3] sm:$0xff]
      %v215 = vmul.f32 %v213, %v214
      %v216 = vsel %vm198, %v210, 0.0
      %217 = vadd.xlane.f32.xlu0 %v216
      %v218 = vpop.xlane.xlu0 %217
      %v219 = vadd.f32 %v215, %v218
      %vm220 = vcmask 7168
      %221 = vst.msk [vmem:[#allocation3] sm:$0xff] %vm220, %v219
      %222 = vst.msk [vmem:[#allocation2] sm:$0xff] %vm220, %v202
      %p223 = scmp.eq.s32.totalorder %s18, %s17
      // Predicated region
      $region33: #{contrastive_loss.1} parent=27 // pred_check
        %p224 = pneg %p223
      $region34: #{contrastive_loss.1} parent=27 // pred_check_branch
        %226 = sbr.rel (%p224) target = $region36
      $region35: #{contrastive_loss.1} parent=27 // pred_region
        %v227 = vlaneseq
        %v228 = vshrl.u32 %v227, 7
        %v229 = vlaneseq
        %v230 = vand.u32 %v229, 127
        %vm231 = vcmp.eq.s32.totalorder %v228, %v230
        %v232 = vsel %vm231, %v195, 0.0
        %v233 = vsel %vm198, %v232, 0.0
        %234 = vadd.xlane.f32.xlu0 %v233
        %v235 = vpop.xlane.xlu0 %234
        %236 = vst.msk [vmem:[#allocation4] sm:$0xff] %vm220, %v235
      $region36: #{contrastive_loss.1} parent=27 // pred_fallthru
        _
      %s237 = sadd.s32 %s17, 1
      %p238 = scmp.lt.s32.totalorder %s237, 0
      %s239 = ssub.s32 0, %s237
      %s240 = scalar_select %p238, %s239, %s237
      %s241 = sand.u32 %s240, 1
      %s242 = ssub.s32 0, %s241
      %s243 = scalar_select %p238, %s242, %s241
      %p244 = scmp.ne.s32.totalorder %s243, 0
      %p245 = scmp.lt.s32.totalorder %s243, 0
      %p246 = pnand %p245, %p244
      %p247 = pneg %p246
      %s248 = sadd.s32 %s243, 2
      %s249 = scalar_select %p247, %s248, %s243
      %p250 = scmp.eq.s32.totalorder %s18, %s249
      // Predicated region
      $region37: #{contrastive_loss.1} parent=27 // pred_check
        %p251 = pneg %p250
      $region38: #{contrastive_loss.1} parent=27 // pred_check_branch
        %253 = sbr.rel (%p251) target = $region40
      $region39: #{contrastive_loss.1} parent=27 // pred_region
        %v254 = vlaneseq
        %v255 = vshrl.u32 %v254, 7
        %v256 = vlaneseq
        %v257 = vand.u32 %v256, 127
        %vm258 = vcmp.eq.s32.totalorder %v255, %v257
        %v259 = vsel %vm258, %v195, 0.0
        %v260 = vsel %vm198, %v259, 0.0
        %261 = vadd.xlane.f32.xlu0 %v260
        %v262 = vpop.xlane.xlu0 %261
        %263 = vst.msk [vmem:[#allocation5] sm:$0xff] %vm220, %v262
      $region40: #{contrastive_loss.1} parent=27 // pred_fallthru
        _
      %p264 = scmp.eq.s32.totalorder %s18, 1
      // Predicated region
      $region41: #{contrastive_loss.1} parent=27 // pred_check
        %p265 = pneg %p264
      $region42: #{contrastive_loss.1} parent=27 // pred_check_branch
        %267 = sbr.rel (%p265) target = $region44
      $region43: #{contrastive_loss.1} parent=27 // pred_region
        %v268 = vld [vmem:[#allocation2] sm:$0xff]
        %v269 = vld [vmem:[#allocation3] sm:$0xff]
        %v270 = vld [vmem:[#allocation4] sm:$0xff]
        %v271 = vsub.f32 %v270, %v268
        %v272 = vmul.f32 %v271, 1.442695
        %v273 = vpow.pop %v272
        %v274 = vsub.f32 %v269, %v273
        %v275 = vsub.f32 0.0, %v268
        %v276 = vmul.f32 %v275, 1.442695
        %v277 = vpow.pop %v276
        %v278 = vmul.f32 %v277, 8.0
        %v279 = vsub.f32 %v274, %v278
        %v280 = vlog2.pop %v279
        %v281 = vmul.f32 %v280, 0.6931472
        %v282 = vadd.f32 %v268, %v281
        %s283 = smul.u32 %s17, 8
        %v284 = vlaneseq
        %v285 = vshrl.u32 %v284, 7
        %v286 = vstv %s283
        %v287 = vadd.s32 %v286, %v285
        %vm288 = vcmp.lt.s32.totalorder %v287, 4
        %vm289 = vcmp.ge.s32.totalorder %v287, 8
        %vm290 = vcmp.lt.s32.totalorder %v287, 12
        %vm291 = vmand %vm289, %vm290
        %vm292 = vmor %vm288, %vm291
        %v293 = vld [vmem:[#allocation5] sm:$0xff]
        %v294 = vsub.f32 %v282, %v293
        %v295 = vsel %vm292, %v294, 0.0
        %296 = vst.msk [vmem:[%s167] sm:$0xff] %vm220, %v295
      $region44: #{contrastive_loss.1} parent=27 // pred_fallthru
        _
      %p297 = scmp.lt.s32.totalorder %s17, 1
      %s298 = scalar_select %p297, %s17, 1
      %s299 = smul.addr %s298, 8
      %s300 = scalar_lea.vmem %s2, %s299
      // Predicated region
      $region45: #{contrastive_loss.1} parent=27 // pred_check
        %p301 = pneg %p95
      $region46: #{contrastive_loss.1} parent=27 // pred_check_branch
        %303 = sbr.rel (%p301) target = $region48
      $region47: #{contrastive_loss.1} parent=27 // pred_region
        _
      $region48: #{contrastive_loss.1} parent=27 // pred_fallthru
        _
    $region28: #{contrastive_loss.1} parent=5 // pred_fallthru
      _
    %p304 = scmp.le.s32.totalorder 2, %s8
    // Predicated region
    $region49: #{contrastive_loss.1} parent=5 // pred_check
      %p305 = pneg %p304
    $region50: #{contrastive_loss.1} parent=5 // pred_check_branch
      %307 = sbr.rel (%p305) target = $region52
    $region51: #{contrastive_loss.1} parent=5 // pred_region
      %s308 = ssub.s32 %s8, 2
      // Predicated region
      $region53: #{contrastive_loss.1} parent=51 // pred_check
        %p309 = pneg %p101
      $region54: #{contrastive_loss.1} parent=51 // pred_check_branch
        %311 = sbr.rel (%p309) target = $region56
      $region55: #{contrastive_loss.1} parent=51 // pred_region
        %p312 = scmp.lt.s32.totalorder %s19, 1
        %s313 = scalar_select %p312, %s19, 1
        %s314 = smul.addr %s313, 8
        %s315 = scalar_lea.vmem %s2, %s314
      $region56: #{contrastive_loss.1} parent=51 // pred_fallthru
        _
    $region52: #{contrastive_loss.1} parent=5 // pred_fallthru
      _
  $region6: #{contrastive_loss.1} parent=0 // loop_footer
    %s12 = sadd.s32 1, %s8
  $region7: #{contrastive_loss.1} parent=0 // loop_footer_branch
    %7 = sbr.rel target = $region3
  $region8: #{contrastive_loss.1} parent=0 // loop_exit
    _

</llo_original>
